<compile_context>
chip_gen: v7x
topology: tpu7x:2x2x1
jax: 0.10.0
libtpu: 0.0.40
codegen_flags: <defaults>
</compile_context>

<pallas_src>
import jax
import jax.numpy as jnp
import numpy as np
from jax.experimental import pallas as pl
from jax.experimental.pallas import tpu as pltpu


def _round_up(x: int, m: int) -> int:
    return ((x + m - 1) // m) * m


def _vmem_capacity_bytes() -> int:
    """Per-TensorCore VMEM capacity of the current chip (generation-aware)."""
    try:
        return int(pltpu.get_tpu_info().vmem_capacity_bytes)
    except Exception:
        return 64 * 1024 * 1024  # conservative fallback (v7x per-core VMEM)


def _pick_tiles(n_rows: int, n_k: int, out_pad: int, vmem_cap: int):
    """Pick (row tile TM, contraction tile TK) for the streaming matmul.

    Budget ~50% of this chip's per-core VMEM; the footprint explicitly counts
    the double-buffered bf16 A and XW tiles, a double-buffered f32 output
    block, the bias and a margin for compiler-internal scratch.
    """
    budget = vmem_cap // 2
    margin = 2 * 1024 * 1024

    m16 = _round_up(max(n_rows, 1), 16)
    tm_cands = [t for t in (1024, 512, 256, 128, 64, 32, 16) if t <= m16] or [16]
    tk_cands = sorted({t for t in (4096, 2048, 1024, 512, 256, 128)
                       if n_k % t == 0} | {n_k}, reverse=True)

    def footprint(tm, tk):
        return (2 * tm * tk * 2            # A tile, bf16, double-buffered
                + 2 * tk * out_pad * 2     # XW tile, bf16, double-buffered
                + 2 * tm * out_pad * 4     # f32 output block (count double buffer)
                + 2 * out_pad * 4          # bias
                + margin)                  # compiler scratch / DMA descriptors

    for tm in tm_cands:
        for tk in tk_cands:
            if footprint(tm, tk) <= budget:
                # v7x megacore: keep >= 2 tiles on the parallel row axis.
                if _round_up(n_rows, tm) // tm < 2 and tm >= 32:
                    tm //= 2
                return tm, tk, footprint(tm, tk)

    raise ValueError(
        f"R-GCN tiling does not fit VMEM: smallest tile (16, 128) needs "
        f"{footprint(16, 128)} bytes but the budget is {budget} bytes "
        f"(VMEM capacity {vmem_cap}). Reduce out_dim or also tile the OUT axis.")


# ----------------------------------------------------------------------------
# Stage 1: XW[r] = X @ W[r]   (tiny matmul, laid out flat as (R*N_k, OUT_pad))
# ----------------------------------------------------------------------------
def _xw_kernel(x_ref, w_ref, o_ref):
    o_ref[...] = jnp.dot(x_ref[...], w_ref[...],
                         preferred_element_type=jnp.float32).astype(o_ref.dtype)


def _xw_pallas(x_b, w_b, n_k, in_pad, out_pad, num_relations):
    txw = max(t for t in (512, 256, 128) if n_k % t == 0)
    kb = n_k // txw
    return pl.pallas_call(
        _xw_kernel,
        out_shape=jax.ShapeDtypeStruct((num_relations * n_k, out_pad), jnp.bfloat16),
        grid=(num_relations, kb),
        in_specs=[
            pl.BlockSpec((txw, in_pad), lambda r, i: (i, 0)),                 # X rows
            pl.BlockSpec((pl.Squeezed(), in_pad, out_pad), lambda r, i: (r, 0, 0)),
        ],
        out_specs=pl.BlockSpec((txw, out_pad), lambda r, i: (r * kb + i, 0)),
        compiler_params=pltpu.CompilerParams(
            dimension_semantics=("parallel", "parallel")),
    )(x_b, w_b)


# ----------------------------------------------------------------------------
# Stage 2: out = A_h @ XW_flat + bias   (streaming tiled matmul)
# ----------------------------------------------------------------------------
def _adj_matmul_kernel(a_ref, xw_ref, b_ref, o_ref):
    k = pl.program_id(1)
    part = jnp.dot(a_ref[...], xw_ref[...], preferred_element_type=jnp.float32)

    @pl.when(k == 0)
    def _():
        o_ref[...] = part            # first reduction step writes (no zero-fill)

    @pl.when(k != 0)
    def _():
        o_ref[...] += part

    @pl.when(k == pl.num_programs(1) - 1)
    def _():
        o_ref[...] += b_ref[...]


def _adj_matmul_pallas(adj_h, xw_flat, bias_row, m_pad, rk, out_pad,
                       tm, tk, vmem_need, vmem_cap):
    vmem_limit = int(max(16 << 20, min(vmem_need + (8 << 20), (vmem_cap * 3) // 4)))
    cost = pl.CostEstimate(
        flops=2 * m_pad * rk * out_pad,
        transcendentals=0,
        bytes_accessed=(m_pad * rk * 2                       # A, read once
                        + (m_pad // tm) * rk * out_pad * 2   # XW, read per row tile
                        + m_pad * out_pad * 4 + out_pad * 4),
    )
    return pl.pallas_call(
        _adj_matmul_kernel,
        out_shape=jax.ShapeDtypeStruct((m_pad, out_pad), jnp.float32),
        grid_spec=pltpu.PrefetchScalarGridSpec(
            num_scalar_prefetch=0,
            grid=(m_pad // tm, rk // tk),                    # reduction axis last
            in_specs=[
                pl.BlockSpec((tm, tk), lambda i, k: (i, k)),        # A row/col tile
                pl.BlockSpec((tk, out_pad), lambda i, k: (k, 0)),   # XW K tile
                pl.BlockSpec((1, out_pad), lambda i, k: (0, 0)),    # bias (resident)
            ],
            out_specs=pl.BlockSpec((tm, out_pad), lambda i, k: (i, 0)),
        ),
        compiler_params=pltpu.CompilerParams(
            dimension_semantics=("parallel", "arbitrary"),
            vmem_limit_bytes=vmem_limit,
        ),
        cost_estimate=cost,
    )(adj_h, xw_flat, bias_row)


# ----------------------------------------------------------------------------
# Glue: stacked adjacency built directly at padded shape, in bf16
# ----------------------------------------------------------------------------
def build_stacked_adjacency(edge_index, edge_type, num_entities, num_relations,
                            m_pad, n_k):
    """Self-edges + per-(relation, source) degree normalization (the torch
    vertical-stacking _add_self_edge / _stack_adj_matrices / _sum_sparse with
    zero dropout), laid out horizontally: A_h[src, r*n_k + dst] = A_r[src, dst].
    Scattered directly into the padded bf16 buffer (values computed in f32,
    cast per edge) — no extra f32 build + pad/cast pass."""
    self_idx = jnp.arange(num_entities, dtype=jnp.int32)
    fr = jnp.concatenate([edge_index[0].astype(jnp.int32), self_idx])
    to = jnp.concatenate([edge_index[1].astype(jnp.int32), self_idx])
    et = jnp.concatenate(
        [edge_type.astype(jnp.int32),
         jnp.full((num_entities,), num_relations - 1, jnp.int32)])

    stacked_rows = et * num_entities + fr     # row id of the vertically stacked adj
    counts = jnp.zeros((num_relations * num_entities,), jnp.float32
                       ).at[stacked_rows].add(1.0)
    vals = (1.0 / counts[stacked_rows]).astype(jnp.bfloat16)

    cols = et * n_k + to                      # horizontal layout column index
    adj = jnp.zeros((m_pad, num_relations * n_k), jnp.bfloat16
                    ).at[fr, cols].add(vals)
    return adj


def _rgcn_layer(x, edge_index, edge_type, weights, bias,
                num_entities, num_relations):
    N, R = num_entities, num_relations
    IN = x.shape[1]
    OUT = weights.shape[2]

    in_pad = _round_up(IN, 128)
    out_pad = _round_up(OUT, 128)
    n_k = _round_up(N, 128)                   # per-relation K block (A cols / X rows)

    vmem_cap = _vmem_capacity_bytes()
    tm, tk, vmem_need = _pick_tiles(N, n_k, out_pad, vmem_cap)
    m_pad = _round_up(N, tm)
    rk = R * n_k

    # Glue: padded bf16 operands + dense stacked adjacency (already padded bf16).
    adj_h = build_stacked_adjacency(edge_index, edge_type, N, R, m_pad, n_k)
    x_b = jnp.pad(x.astype(jnp.bfloat16), ((0, n_k - N), (0, in_pad - IN)))
    w_b = jnp.pad(weights.astype(jnp.bfloat16),
                  ((0, 0), (0, in_pad - IN), (0, out_pad - OUT)))
    b_b = jnp.pad(bias.astype(jnp.float32), (0, out_pad - OUT)).reshape(1, out_pad)

    # Stage 1: XW[r] = X @ W[r]  (tiny), flattened to (R*n_k, out_pad) bf16.
    xw_flat = _xw_pallas(x_b, w_b, n_k, in_pad, out_pad, R)

    # Stage 2: out = A_h @ XW_flat + bias  (streaming, A-bandwidth-bound).
    out = _adj_matmul_pallas(adj_h, xw_flat, b_b, m_pad, rk, out_pad,
                             tm, tk, vmem_need, vmem_cap)
    return out[:N, :OUT]


def rgcn_forward(x, r, edge_index, edge_type, weights, bias,
                 num_entities, num_relations):
    """Equivalent of TorchRgcnLayer.forward (vertical stacking, no decomposition)."""
    out = _rgcn_layer(x, edge_index, edge_type, weights, bias,
                      num_entities, num_relations)
    return out, r


if __name__ == "__main__":
    key = jax.random.PRNGKey(0)

    # Small, module-consistent shapes.
    num_entities = 8
    orig_num_relations = 3
    num_relations = orig_num_relations * 2 + 1   # = 7 (inverse rels + self-loop rel)
    in_dim = 32
    out_dim = 32
    num_edges_one_dir = 12

    k1, k2, k3, k4, k5, k6, k7 = jax.random.split(key, 7)
    src = jax.random.randint(k1, (num_edges_one_dir,), 0, num_entities)
    dst = jax.random.randint(k2, (num_edges_one_dir,), 0, num_entities)
    etype = jax.random.randint(k3, (num_edges_one_dir,), 0, orig_num_relations)

    # torch-rgcn convention: forward edges followed by inverse edges.
    edge_index = jnp.stack([jnp.concatenate([src, dst]),
                            jnp.concatenate([dst, src])])
    edge_type = jnp.concatenate([etype, etype + orig_num_relations])

    # Deterministic parameter init (stand-in for weight_init / bias_init).
    x = jax.random.normal(k4, (num_entities, in_dim), jnp.float32)
    r = jax.random.normal(k5, (num_relations, in_dim), jnp.float32)  # passed through
    weights = 0.1 * jax.random.normal(
        k6, (num_relations, in_dim, out_dim), jnp.float32)
    bias = 0.1 * jax.random.normal(k7, (out_dim,), jnp.float32)

    out, r_out = rgcn_forward(x, r, edge_index, edge_type, weights, bias,
                              num_entities, num_relations)
    out = jax.block_until_ready(out)
    assert out.shape == (num_entities, out_dim)
    assert r_out.shape == r.shape

    # Full-precision (f64) reference of the torch vertical-stacking forward.
    # The kernel uses bf16 adjacency / X / W / XW with f32 accumulation, so the
    # tolerance absorbs the documented ~0.5%-relative quantization difference.
    ei = np.asarray(edge_index)
    et = np.asarray(edge_type)
    self_idx = np.arange(num_entities)
    fr_np = np.concatenate([ei[0], self_idx])
    to_np = np.concatenate([ei[1], self_idx])
    et_np = np.concatenate([et, np.full(num_entities, num_relations - 1)])
    rows = et_np * num_entities + fr_np
    counts = np.zeros(num_relations * num_entities, np.float64)
    np.add.at(counts, rows, 1.0)
    vals = 1.0 / counts[rows]
    adj_ref = np.zeros((num_relations, num_entities, num_entities), np.float64)
    np.add.at(adj_ref, (et_np, fr_np, to_np), vals)
    x_np = np.asarray(x, np.float64)
    w_np = np.asarray(weights, np.float64)
    ax_np = np.einsum('rnm,mi->rni', adj_ref, x_np)
    ref = np.einsum('rio,rni->no', w_np, ax_np) + np.asarray(bias, np.float64)

    np.testing.assert_allclose(np.asarray(out), ref, rtol=2e-2, atol=2e-2)
    print("KERNEL_OK")
</pallas_src>

<mosaic_0001>
module attributes {stable_mosaic.version = 11 : i64} {
  func.func @_xw_kernel(%arg0: i32, %arg1: i32, %arg2: memref<128x128xbf16, #tpu.memory_space<vmem>>, %arg3: memref<1x128x128xbf16, #tpu.memory_space<vmem>>, %arg4: memref<128x128xbf16, #tpu.memory_space<vmem>>) attributes {dimension_semantics = [#tpu.dimension_semantics<parallel>, #tpu.dimension_semantics<parallel>], iteration_bounds = array<i64: 7, 1>, scalar_prefetch = 0 : i64, scratch_operands = 0 : i64, tpu.core_type = #tpu.core_type<tc>, window_params = [{transform_indices = @transform_0, window_bounds = array<i64: 128, 128>}, {transform_indices = @transform_1, window_bounds = array<i64: 1, 128, 128>}, {transform_indices = @transform_2, window_bounds = array<i64: 128, 128>}]} {
    %c0 = arith.constant 0 : index
    %c0_0 = arith.constant 0 : index
    %0 = vector.load %arg2[%c0, %c0_0] : memref<128x128xbf16, #tpu.memory_space<vmem>>, vector<128x128xbf16>
    %c0_1 = arith.constant 0 : index
    %c0_2 = arith.constant 0 : index
    %c0_3 = arith.constant 0 : index
    %1 = vector.load %arg3[%c0_1, %c0_2, %c0_3] : memref<1x128x128xbf16, #tpu.memory_space<vmem>>, vector<1x128x128xbf16>
    %2 = vector.shape_cast %1 : vector<1x128x128xbf16> to vector<128x128xbf16>
    %cst = arith.constant dense<0.000000e+00> : vector<128x128xf32>
    %3 = tpu.matmul %0, %2, %cst {dimension_numbers = #tpu.dot_dimension_numbers<[1], [0], [0], [1], [0, 0, 1, 1], [], []>} : vector<128x128xbf16>, vector<128x128xbf16>, vector<128x128xf32> -> vector<128x128xf32>
    %4 = arith.truncf %3 : vector<128x128xf32> to vector<128x128xbf16>
    %c0_4 = arith.constant 0 : index
    %c0_5 = arith.constant 0 : index
    %5 = vector.load %arg4[%c0_4, %c0_5] : memref<128x128xbf16, #tpu.memory_space<vmem>>, vector<128x128xbf16>
    tpu.vector_store %arg4[%c0_4, %c0_5], %4 {strides = array<i32>} : memref<128x128xbf16, #tpu.memory_space<vmem>>, vector<128x128xbf16>,
    return
  }
  func.func @transform_0(%arg0: i32, %arg1: i32) -> (i32, i32) {
    %c0_i32 = arith.constant 0 : i32
    %c0_i32_0 = arith.constant 0 : i32
    return %arg1, %c0_i32 : i32, i32
  }
  func.func @transform_1(%arg0: i32, %arg1: i32) -> (i32, i32, i32) {
    %c0_i32 = arith.constant 0 : i32
    %c0_i32_0 = arith.constant 0 : i32
    %c0_i32_1 = arith.constant 0 : i32
    return %arg0, %c0_i32, %c0_i32_0 : i32, i32, i32
  }
  func.func @transform_2(%arg0: i32, %arg1: i32) -> (i32, i32) {
    %c1_i32 = arith.constant 1 : i32
    %0 = arith.muli %arg0, %c1_i32 : i32
    %1 = arith.addi %0, %arg1 : i32
    %c0_i32 = arith.constant 0 : i32
    %c0_i32_0 = arith.constant 0 : i32
    return %1, %c0_i32 : i32, i32
  }
}

</mosaic_0001>

<llo_original>
// kernel: tpu_custom_call.1
$region0: #{tpu_custom_call.1}
  #allocation0 [shape = 'u32[]', space=smem, size = 0x4, offset = 0x4, fixed_abs, tag = 'smem constant byte address 0x4 - core index']
  #allocation1 [shape = 'u32[144,128]{1,0:T(1,128)}', space=vmem, size = 0x12000, scoped, tag = 'internal scratch']
  %s0 = inlined_call_operand.hbm [shape: bf16[128,128], index: 0, kind: input, shape index: {}]
  %s1 = inlined_call_operand.hbm [shape: bf16[7,128,128], index: 1, kind: input, shape index: {}]
  %s2 = inlined_call_operand.hbm [shape: bf16[896,128], index: 2, kind: output, shape index: {}]
  %s3 = sld [smem:[#allocation0]]
  $region49: #{tpu_custom_call.1} parent=0
    _
  %s5 = ssub.s32 1, %s3
  %s6 = scalar_select 0, %s5, %s3
  $region1: #{tpu_custom_call.1} parent=0
    #allocation2 [shape = 'u8[32768]{0}', space=vmem, size = 0x8000, scoped, tag = 'input window, operand 0, single buffered']
    #allocation3 [shape = 's32[2]{0}', space=sflag, size = 0x8, scoped, tag = 'scoped memory for tpu_custom_call.1']
    #allocation4 [shape = 's32[2]{0}', space=sflag, size = 0x8, scoped, tag = 'scoped memory for tpu_custom_call.1']
    #allocation5 [shape = 'u8[65536]{0}', space=vmem, size = 0x10000, scoped, tag = 'input window, operand 1']
    #allocation6 [shape = 's32[2]{0}', space=sflag, size = 0x8, scoped, tag = 'scoped memory for tpu_custom_call.1']
    #allocation7 [shape = 'u8[65536]{0}', space=vmem, size = 0x10000, scoped, tag = 'output window, operand 0']
    %7 = vsyncpa [#allocation3], 0
    %8 = vsyncpa [#allocation6], 0
    %s9 = scalar_lea.sflag [#allocation6], 1
    %10 = vsyncpa %s9, 0
    %11 = vsyncpa [#allocation4], 0
    %s12 = scalar_lea.sflag [#allocation4], 1
    %13 = vsyncpa %s12, 0
    loop: start=0, step=1, limit=9
    $region2: #{tpu_custom_call.1} parent=1 // loop_pre_header
      _
    $region3: #{tpu_custom_call.1} parent=1 // loop_header
      %s15 = sphi 0, %s19
      %p16 = scmp.ge.s32.totalorder %s15, 9
      %s22 = sphi 0, %s34
      %s23 = sphi 0, %s30
      %s24 = sphi 0, %s22
      %s25 = sphi 0, %s23
      %s26 = sphi 0, %s24
      %s27 = sphi 0, %s25
      %s37 = sphi 0, %s39
      %s40 = sphi 0, %s37
      %s41 = sphi 0, %s40
      %s57 = sphi 0, %s41
      %s63 = sphi 0, %s65
      %s66 = sphi 0, %s63
      %s67 = sphi 0, %s66
      %s83 = sphi 0, %s67
      %s91 = sphi 0, %s93
      %s94 = sphi 0, %s91
      %s95 = sphi 0, %s94
      %s111 = sphi 0, %s95
    $region4: #{tpu_custom_call.1} parent=1 // loop_header_branch
      %18 = sbr.rel (%p16) target = $region8
    $region5: #{tpu_custom_call.1} parent=1 // loop_body
      %s20 = ssub.s32 %s15, 1
      %s21 = ssub.s32 %s15, 2
      %s28 = sadd.s32 1, %s23
      %p29 = scmp.ge.s32.totalorder %s28, 1
      %s30 = scalar_select %p29, 0, %s28
      %s31 = sadd.s32 1, %s22
      %s32 = scalar_select %p29, %s31, %s22
      %p33 = scmp.ge.s32.totalorder %s32, 7
      %s34 = scalar_select %p33, 0, %s32
      %s35 = ssub.s32 %s23, %s30
      %p36 = scmp.eq.s32.totalorder %s35, 0
      %s38 = sadd.s32 %s37, 1
      %s39 = scalar_select %p36, %s37, %s38
      %p42 = pneg %p36
      %p43 = scmp.eq.s32.totalorder %s15, 6
      %p44 = por %p42, %p43
      %p45 = scmp.ne.s32.totalorder %s37, %s40
      %p46 = scmp.eq.s32.totalorder %s15, 0
      %p47 = por %p45, %p46
      %p48 = scmp.ne.s32.totalorder %s37, %s40
      %p49 = scmp.eq.s32.totalorder %s20, 6
      %p50 = por %p48, %p49
      %p51 = scmp.ne.s32.totalorder %s40, %s41
      %p52 = scmp.eq.s32.totalorder %s20, 0
      %p53 = por %p51, %p52
      %p54 = scmp.ne.s32.totalorder %s40, %s41
      %p55 = scmp.eq.s32.totalorder %s21, 6
      %p56 = por %p54, %p55
      %p58 = scmp.ne.s32.totalorder %s41, %s57
      %p59 = scmp.eq.s32.totalorder %s21, 0
      %p60 = por %p58, %p59
      %s61 = ssub.s32 %s22, %s34
      %p62 = scmp.eq.s32.totalorder %s61, 0
      %s64 = sadd.s32 %s63, 1
      %s65 = scalar_select %p62, %s63, %s64
      %p68 = pneg %p62
      %p69 = scmp.eq.s32.totalorder %s15, 6
      %p70 = por %p68, %p69
      %p71 = scmp.ne.s32.totalorder %s63, %s66
      %p72 = scmp.eq.s32.totalorder %s15, 0
      %p73 = por %p71, %p72
      %p74 = scmp.ne.s32.totalorder %s63, %s66
      %p75 = scmp.eq.s32.totalorder %s20, 6
      %p76 = por %p74, %p75
      %p77 = scmp.ne.s32.totalorder %s66, %s67
      %p78 = scmp.eq.s32.totalorder %s20, 0
      %p79 = por %p77, %p78
      %p80 = scmp.ne.s32.totalorder %s66, %s67
      %p81 = scmp.eq.s32.totalorder %s21, 6
      %p82 = por %p80, %p81
      %p84 = scmp.ne.s32.totalorder %s67, %s83
      %p85 = scmp.eq.s32.totalorder %s21, 0
      %p86 = por %p84, %p85
      %s87 = sadd.s32 %s22, %s23
      %s88 = sadd.s32 %s34, %s30
      %s89 = ssub.s32 %s87, %s88
      %p90 = scmp.eq.s32.totalorder %s89, 0
      %s92 = sadd.s32 %s91, 1
      %s93 = scalar_select %p90, %s91, %s92
      %p96 = pneg %p90
      %p97 = scmp.eq.s32.totalorder %s15, 6
      %p98 = por %p96, %p97
      %p99 = scmp.ne.s32.totalorder %s91, %s94
      %p100 = scmp.eq.s32.totalorder %s15, 0
      %p101 = por %p99, %p100
      %p102 = scmp.ne.s32.totalorder %s91, %s94
      %p103 = scmp.eq.s32.totalorder %s20, 6
      %p104 = por %p102, %p103
      %p105 = scmp.ne.s32.totalorder %s94, %s95
      %p106 = scmp.eq.s32.totalorder %s20, 0
      %p107 = por %p105, %p106
      %p108 = scmp.ne.s32.totalorder %s94, %s95
      %p109 = scmp.eq.s32.totalorder %s21, 6
      %p110 = por %p108, %p109
      %p112 = scmp.ne.s32.totalorder %s95, %s111
      %p113 = scmp.eq.s32.totalorder %s21, 0
      %p114 = por %p112, %p113
      %p115 = scmp.le.s32.totalorder 1, %s15
      %p116 = scmp.lt.s32.totalorder %s15, 8
      %p117 = pnand %p115, %p116
      %p118 = pneg %p117
      // Predicated region
      $region9: #{tpu_custom_call.1} parent=5 // pred_check
        _
      $region10: #{tpu_custom_call.1} parent=5 // pred_check_branch
        %120 = sbr.rel (%p117) target = $region12
      $region11: #{tpu_custom_call.1} parent=5 // pred_region
        %s121 = ssub.s32 %s15, 1
        // Predicated region
        $region13: #{tpu_custom_call.1} parent=11 // pred_check
          %p122 = pneg %p53
        $region14: #{tpu_custom_call.1} parent=11 // pred_check_branch
          %124 = sbr.rel (%p122) target = $region16
        $region15: #{tpu_custom_call.1} parent=11 // pred_region
          %s125 = smul.u32 16, %s25
          %s127 = ssub.s32 1024, 1024
          %128 = vsyncadd [#allocation3], %s127
          %s129 = smul.addr %s125, 64
          %s130 = scalar_lea.hbm %s0, %s129
          %s131 = sshll.u32 [#allocation2], 4
          %s132 = int_to_ptr.vmem [resolvable:$true] %s131
          %137 = dma.hbm_to_vmem [thread:$0]  %s130, 1024, %s132, [#allocation3], 64, 64, 4
        $region16: #{tpu_custom_call.1} parent=11 // pred_fallthru
          _
      $region12: #{tpu_custom_call.1} parent=5 // pred_fallthru
        _
      %p138 = scmp.lt.s32.totalorder %s15, 7
      // Predicated region
      $region17: #{tpu_custom_call.1} parent=5 // pred_check
        %p139 = pneg %p138
      $region18: #{tpu_custom_call.1} parent=5 // pred_check_branch
        %141 = sbr.rel (%p139) target = $region20
      $region19: #{tpu_custom_call.1} parent=5 // pred_region
        // Predicated region
        $region21: #{tpu_custom_call.1} parent=19 // pred_check
          %p142 = pneg %p73
        $region22: #{tpu_custom_call.1} parent=19 // pred_check_branch
          %144 = sbr.rel (%p142) target = $region24
        $region23: #{tpu_custom_call.1} parent=19 // pred_region
          %s145 = sand.u32 %s63, 1
          %s146 = scalar_lea.sflag [#allocation6], %s145
          %s147 = sand.u32 %s63, 1
          %s148 = smul.addr %s147, 64
          %s149 = scalar_lea.vmem [#allocation5], %s148
          %s151 = ssub.s32 1024, 1024
          %152 = vsyncadd %s146, %s151
          %s153 = smul.addr %s22, 16
          %s154 = smul.addr %s153, 64
          %s155 = scalar_lea.hbm %s1, %s154
          %s156 = sshll.u32 %s149, 4
          %s157 = int_to_ptr.vmem [resolvable:$true] %s156
          %162 = dma.hbm_to_vmem [thread:$0]  %s155, 1024, %s157, %s146, 64, 64, 4
        $region24: #{tpu_custom_call.1} parent=19 // pred_fallthru
          _
      $region20: #{tpu_custom_call.1} parent=5 // pred_fallthru
        _
      %p163 = scmp.le.s32.totalorder 1, %s15
      %p164 = scmp.lt.s32.totalorder %s15, 8
      %p165 = pnand %p163, %p164
      %p166 = pneg %p165
      // Predicated region
      $region25: #{tpu_custom_call.1} parent=5 // pred_check
        _
      $region26: #{tpu_custom_call.1} parent=5 // pred_check_branch
        %168 = sbr.rel (%p165) target = $region28
      $region27: #{tpu_custom_call.1} parent=5 // pred_region
        %s169 = ssub.s32 %s15, 1
        // Predicated region
        $region29: #{tpu_custom_call.1} parent=27 // pred_check
          %p170 = pneg %p53
        $region30: #{tpu_custom_call.1} parent=27 // pred_check_branch
          %172 = sbr.rel (%p170) target = $region32
        $region31: #{tpu_custom_call.1} parent=27 // pred_region
          %173 = dma.done [#allocation3], 1024
        $region32: #{tpu_custom_call.1} parent=27 // pred_fallthru
          _
        %s174 = sand.u32 %s66, 1
        %s175 = scalar_lea.sflag [#allocation6], %s174
        %s176 = sand.u32 %s66, 1
        %s177 = smul.addr %s176, 64
        %s178 = scalar_lea.vmem [#allocation5], %s177
        // Predicated region
        $region33: #{tpu_custom_call.1} parent=27 // pred_check
          %p179 = pneg %p79
        $region34: #{tpu_custom_call.1} parent=27 // pred_check_branch
          %181 = sbr.rel (%p179) target = $region36
        $region35: #{tpu_custom_call.1} parent=27 // pred_region
          %182 = dma.done %s175, 1024
        $region36: #{tpu_custom_call.1} parent=27 // pred_fallthru
          _
        %p183 = pneg %p53
        %p184 = pneg %p50
        %s185 = sand.u32 %s66, 1
        %s186 = scalar_lea.sflag [#allocation6], %s185
        %s187 = sand.u32 %s66, 1
        %s188 = smul.addr %s187, 64
        %s189 = scalar_lea.vmem [#allocation5], %s188
        %p190 = pneg %p79
        %p191 = pneg %p76
        %p192 = pneg %p107
        %p193 = pneg %p104
        %s194 = sand.u32 %s94, 1
        %s195 = scalar_lea.sflag [#allocation4], %s194
        %s196 = sand.u32 %s94, 1
        %s197 = smul.addr %s196, 64
        %s198 = scalar_lea.vmem [#allocation7], %s197
        %s199 = smul.u32 16, %s25
        %s200 = sadd.s32 %s24, %s25
        %s201 = smul.u32 16, %s200
        %v203 = vld [vmem:[#allocation2] sm:$0xf]
        %v204 = vld [vmem:[#allocation2 + $0x4] sm:$0xf]
        %v205 = vld [vmem:[#allocation2 + $0x8] sm:$0xf]
        %v206 = vld [vmem:[#allocation2 + $0xc] sm:$0xf]
        %v207 = vld [vmem:[#allocation2 + $0x10] sm:$0xf]
        %v208 = vld [vmem:[#allocation2 + $0x14] sm:$0xf]
        %v209 = vld [vmem:[#allocation2 + $0x18] sm:$0xf]
        %v210 = vld [vmem:[#allocation2 + $0x1c] sm:$0xf]
        %v211 = vld [vmem:[#allocation2 + $0x20] sm:$0xf]
        %v212 = vld [vmem:[#allocation2 + $0x24] sm:$0xf]
        %v213 = vld [vmem:[#allocation2 + $0x28] sm:$0xf]
        %v214 = vld [vmem:[#allocation2 + $0x2c] sm:$0xf]
        %v215 = vld [vmem:[#allocation2 + $0x30] sm:$0xf]
        %v216 = vld [vmem:[#allocation2 + $0x34] sm:$0xf]
        %v217 = vld [vmem:[#allocation2 + $0x38] sm:$0xf]
        %v218 = vld [vmem:[#allocation2 + $0x3c] sm:$0xf]
        %v219 = vld [vmem:[%s178] sm:$0xf]
        %v220 = vld [vmem:[%s178 + $0x4] sm:$0xf]
        %v221 = vld [vmem:[%s178 + $0x8] sm:$0xf]
        %v222 = vld [vmem:[%s178 + $0xc] sm:$0xf]
        %v223 = vld [vmem:[%s178 + $0x10] sm:$0xf]
        %v224 = vld [vmem:[%s178 + $0x14] sm:$0xf]
        %v225 = vld [vmem:[%s178 + $0x18] sm:$0xf]
        %v226 = vld [vmem:[%s178 + $0x1c] sm:$0xf]
        %v227 = vld [vmem:[%s178 + $0x20] sm:$0xf]
        %v228 = vld [vmem:[%s178 + $0x24] sm:$0xf]
        %v229 = vld [vmem:[%s178 + $0x28] sm:$0xf]
        %v230 = vld [vmem:[%s178 + $0x2c] sm:$0xf]
        %v231 = vld [vmem:[%s178 + $0x30] sm:$0xf]
        %v232 = vld [vmem:[%s178 + $0x34] sm:$0xf]
        %v233 = vld [vmem:[%s178 + $0x38] sm:$0xf]
        %v234 = vld [vmem:[%s178 + $0x3c] sm:$0xf]
        %v251 = vunpack.c.l.b16 %v203
        %v252 = vunpack.c.l.b16 %v204
        %v253 = vunpack.c.l.b16 %v205
        %v254 = vunpack.c.l.b16 %v206
        %v255 = vunpack.c.l.b16 %v207
        %v256 = vunpack.c.l.b16 %v208
        %v257 = vunpack.c.l.b16 %v209
        %v258 = vunpack.c.l.b16 %v210
        %v259 = vunpack.c.l.b16 %v211
        %v260 = vunpack.c.l.b16 %v212
        %v261 = vunpack.c.l.b16 %v213
        %v262 = vunpack.c.l.b16 %v214
        %v263 = vunpack.c.l.b16 %v215
        %v264 = vunpack.c.l.b16 %v216
        %v265 = vunpack.c.l.b16 %v217
        %v266 = vunpack.c.l.b16 %v218
        %v267 = vpack.c.b16 %v252, %v251
        %v268 = vpack.c.b16 %v254, %v253
        %v269 = vpack.c.b16 %v256, %v255
        %v270 = vpack.c.b16 %v258, %v257
        %v271 = vpack.c.b16 %v260, %v259
        %v272 = vpack.c.b16 %v262, %v261
        %v273 = vpack.c.b16 %v264, %v263
        %v274 = vpack.c.b16 %v266, %v265
        %v299 = vunpack.c.l.b16 %v219
        %v300 = vunpack.c.l.b16 %v220
        %v301 = vunpack.c.l.b16 %v221
        %v302 = vunpack.c.l.b16 %v222
        %v303 = vunpack.c.l.b16 %v223
        %v304 = vunpack.c.l.b16 %v224
        %v305 = vunpack.c.l.b16 %v225
        %v306 = vunpack.c.l.b16 %v226
        %v307 = vunpack.c.l.b16 %v227
        %v308 = vunpack.c.l.b16 %v228
        %v309 = vunpack.c.l.b16 %v229
        %v310 = vunpack.c.l.b16 %v230
        %v311 = vunpack.c.l.b16 %v231
        %v312 = vunpack.c.l.b16 %v232
        %v313 = vunpack.c.l.b16 %v233
        %v314 = vunpack.c.l.b16 %v234
        %v315 = vpack.c.b16 %v300, %v299
        %v316 = vpack.c.b16 %v302, %v301
        %v317 = vpack.c.b16 %v304, %v303
        %v318 = vpack.c.b16 %v306, %v305
        %v319 = vpack.c.b16 %v308, %v307
        %v320 = vpack.c.b16 %v310, %v309
        %v321 = vpack.c.b16 %v312, %v311
        %v322 = vpack.c.b16 %v314, %v313
        %331 = vmatprep.subr.bf16.mxu0 0
        %332 = vmatpush1.bf16.msra.mxu0 %v315
        %333 = vmatprep.subr.bf16.mxu0 0
        %334 = vmatpush1.bf16.msra.mxu0 %v316
        %335 = vmatprep.subr.bf16.mxu0 0
        %336 = vmatpush1.bf16.msra.mxu0 %v317
        %337 = vmatprep.subr.bf16.mxu0 0
        %338 = vmatpush1.bf16.msra.mxu0 %v318
        %339 = vmatprep.subr.bf16.mxu0 0
        %340 = vmatpush1.bf16.msra.mxu0 %v319
        %341 = vmatprep.subr.bf16.mxu0 0
        %342 = vmatpush1.bf16.msra.mxu0 %v320
        %343 = vmatprep.subr.bf16.mxu0 0
        %344 = vmatpush1.bf16.msra.mxu0 %v321
        %345 = vmatprep.subr.bf16.mxu0 0
        %346 = vmatpush1.bf16.msra.mxu0 %v322
        %347 = vmatprep.subr.bf16.mxu0 0
        %348 = vmatpush1.bf16.msra.mxu0 0
        %349 = vmatprep.subr.bf16.mxu0 0
        %350 = vmatpush1.bf16.msra.mxu0 0
        %351 = vmatprep.subr.bf16.mxu0 0
        %352 = vmatpush1.bf16.msra.mxu0 0
        %353 = vmatprep.subr.bf16.mxu0 0
        %354 = vmatpush1.bf16.msra.mxu0 0
        %355 = vmatprep.subr.bf16.mxu0 0
        %356 = vmatpush1.bf16.msra.mxu0 0
        %357 = vmatprep.subr.bf16.mxu0 0
        %358 = vmatpush1.bf16.msra.mxu0 0
        %359 = vmatprep.subr.bf16.mxu0 0
        %360 = vmatpush1.bf16.msra.mxu0 0
        %361 = vmatprep.subr.bf16.mxu0 0
        %362 = vmatpush1.bf16.msra.mxu0 0
        %363 = vmatprep.mubr.bf16.mxu0 0
        %364 = vmatmul.mubr.bf16.gmra.mrb[0].mxu0 %v267
        %v365 = vpop.f32.mrb[0].mxu0
        %v366 = vadd.f32 0.0, %v365
        %v367 = vpop.f32.mrb[0].mxu0
        %v368 = vpop.f32.mrb[0].mxu0
        %v369 = vadd.f32 0.0, %v368
        %v370 = vpop.f32.mrb[0].mxu0
        %371 = vmatprep.mubr.bf16.mxu0 0
        %372 = vmatmul.mubr.bf16.gmra.mrb[0].mxu0 %v268
        %v373 = vpop.f32.mrb[0].mxu0
        %v374 = vadd.f32 0.0, %v373
        %v375 = vpop.f32.mrb[0].mxu0
        %v376 = vpop.f32.mrb[0].mxu0
        %v377 = vadd.f32 0.0, %v376
        %v378 = vpop.f32.mrb[0].mxu0
        %379 = vmatprep.mubr.bf16.mxu0 0
        %380 = vmatmul.mubr.bf16.gmra.mrb[0].mxu0 %v269
        %v381 = vpop.f32.mrb[0].mxu0
        %v382 = vadd.f32 0.0, %v381
        %v383 = vpop.f32.mrb[0].mxu0
        %v384 = vpop.f32.mrb[0].mxu0
        %v385 = vadd.f32 0.0, %v384
        %v386 = vpop.f32.mrb[0].mxu0
        %387 = vmatprep.mubr.bf16.mxu0 0
        %388 = vmatmul.mubr.bf16.gmra.mrb[0].mxu0 %v270
        %v389 = vpop.f32.mrb[0].mxu0
        %v390 = vadd.f32 0.0, %v389
        %v391 = vpop.f32.mrb[0].mxu0
        %v392 = vpop.f32.mrb[0].mxu0
        %v393 = vadd.f32 0.0, %v392
        %v394 = vpop.f32.mrb[0].mxu0
        %395 = vmatprep.mubr.bf16.mxu0 0
        %396 = vmatmul.mubr.bf16.gmra.mrb[0].mxu0 %v271
        %v397 = vpop.f32.mrb[0].mxu0
        %v398 = vadd.f32 0.0, %v397
        %v399 = vpop.f32.mrb[0].mxu0
        %v400 = vpop.f32.mrb[0].mxu0
        %v401 = vadd.f32 0.0, %v400
        %v402 = vpop.f32.mrb[0].mxu0
        %403 = vmatprep.mubr.bf16.mxu0 0
        %404 = vmatmul.mubr.bf16.gmra.mrb[0].mxu0 %v272
        %v405 = vpop.f32.mrb[0].mxu0
        %v406 = vadd.f32 0.0, %v405
        %v407 = vpop.f32.mrb[0].mxu0
        %v408 = vpop.f32.mrb[0].mxu0
        %v409 = vadd.f32 0.0, %v408
        %v410 = vpop.f32.mrb[0].mxu0
        %411 = vmatprep.mubr.bf16.mxu0 0
        %412 = vmatmul.mubr.bf16.gmra.mrb[0].mxu0 %v273
        %v413 = vpop.f32.mrb[0].mxu0
        %v414 = vadd.f32 0.0, %v413
        %v415 = vpop.f32.mrb[0].mxu0
        %v416 = vpop.f32.mrb[0].mxu0
        %v417 = vadd.f32 0.0, %v416
        %v418 = vpop.f32.mrb[0].mxu0
        %419 = vmatprep.mubr.bf16.mxu0 0
        %420 = vmatmul.mubr.bf16.gmra.mrb[0].mxu0 %v274
        %v421 = vpop.f32.mrb[0].mxu0
        %v422 = vadd.f32 0.0, %v421
        %v423 = vpop.f32.mrb[0].mxu0
        %v424 = vpop.f32.mrb[0].mxu0
        %v425 = vadd.f32 0.0, %v424
        %v426 = vpop.f32.mrb[0].mxu0
        %427 = vdwg.mxu0
        %v428 = vpack.c.bf16 %v369, %v366
        %v429 = vpack.c.bf16 %v377, %v374
        %v430 = vpack.c.bf16 %v385, %v382
        %v431 = vpack.c.bf16 %v393, %v390
        %v432 = vpack.c.bf16 %v401, %v398
        %v433 = vpack.c.bf16 %v409, %v406
        %v434 = vpack.c.bf16 %v417, %v414
        %v435 = vpack.c.bf16 %v425, %v422
        %v444 = vunpack.c.l.b16 %v428
        %v445 = vunpack.c.h.b16 %v428
        %v446 = vunpack.c.l.b16 %v429
        %v447 = vunpack.c.h.b16 %v429
        %v448 = vunpack.c.l.b16 %v430
        %v449 = vunpack.c.h.b16 %v430
        %v450 = vunpack.c.l.b16 %v431
        %v451 = vunpack.c.h.b16 %v431
        %v452 = vunpack.c.l.b16 %v432
        %v453 = vunpack.c.h.b16 %v432
        %v454 = vunpack.c.l.b16 %v433
        %v455 = vunpack.c.h.b16 %v433
        %v456 = vunpack.c.l.b16 %v434
        %v457 = vunpack.c.h.b16 %v434
        %v458 = vunpack.c.l.b16 %v435
        %v459 = vunpack.c.h.b16 %v435
        %v460 = vpack.c.b16 %v444, %v444
        %v461 = vpack.c.b16 %v445, %v445
        %v462 = vpack.c.b16 %v446, %v446
        %v463 = vpack.c.b16 %v447, %v447
        %v464 = vpack.c.b16 %v448, %v448
        %v465 = vpack.c.b16 %v449, %v449
        %v466 = vpack.c.b16 %v450, %v450
        %v467 = vpack.c.b16 %v451, %v451
        %v468 = vpack.c.b16 %v452, %v452
        %v469 = vpack.c.b16 %v453, %v453
        %v470 = vpack.c.b16 %v454, %v454
        %v471 = vpack.c.b16 %v455, %v455
        %v472 = vpack.c.b16 %v456, %v456
        %v473 = vpack.c.b16 %v457, %v457
        %v474 = vpack.c.b16 %v458, %v458
        %v475 = vpack.c.b16 %v459, %v459
        %492 = vst [vmem:[%s198] sm:$0xf] %v460
        %493 = vst [vmem:[%s198 + $0x4] sm:$0xf] %v461
        %494 = vst [vmem:[%s198 + $0x8] sm:$0xf] %v462
        %495 = vst [vmem:[%s198 + $0xc] sm:$0xf] %v463
        %496 = vst [vmem:[%s198 + $0x10] sm:$0xf] %v464
        %497 = vst [vmem:[%s198 + $0x14] sm:$0xf] %v465
        %498 = vst [vmem:[%s198 + $0x18] sm:$0xf] %v466
        %499 = vst [vmem:[%s198 + $0x1c] sm:$0xf] %v467
        %500 = vst [vmem:[%s198 + $0x20] sm:$0xf] %v468
        %501 = vst [vmem:[%s198 + $0x24] sm:$0xf] %v469
        %502 = vst [vmem:[%s198 + $0x28] sm:$0xf] %v470
        %503 = vst [vmem:[%s198 + $0x2c] sm:$0xf] %v471
        %504 = vst [vmem:[%s198 + $0x30] sm:$0xf] %v472
        %505 = vst [vmem:[%s198 + $0x34] sm:$0xf] %v473
        %506 = vst [vmem:[%s198 + $0x38] sm:$0xf] %v474
        %507 = vst [vmem:[%s198 + $0x3c] sm:$0xf] %v475
        %s508 = sand.u32 %s94, 1
        %s509 = scalar_lea.sflag [#allocation4], %s508
        %s510 = sand.u32 %s94, 1
        %s511 = smul.addr %s510, 64
        %s512 = scalar_lea.vmem [#allocation7], %s511
        // Predicated region
        $region37: #{tpu_custom_call.1} parent=27 // pred_check
          %p513 = pneg %p104
        $region38: #{tpu_custom_call.1} parent=27 // pred_check_branch
          %515 = sbr.rel (%p513) target = $region40
        $region39: #{tpu_custom_call.1} parent=27 // pred_region
          %s516 = sadd.s32 %s24, %s25
          %s517 = smul.u32 16, %s516
          %s519 = ssub.s32 1024, 1024
          %520 = vsyncadd %s509, %s519
          %s521 = smul.addr %s517, 64
          %s522 = scalar_lea.hbm %s2, %s521
          %s523 = sshll.u32 %s512, 4
          %s524 = int_to_ptr.vmem [resolvable:$true] %s523
          %529 = dma.vmem_to_hbm [thread:$0]  %s524, 1024, %s522, %s509, 64, 64, 4
        $region40: #{tpu_custom_call.1} parent=27 // pred_fallthru
          _
      $region28: #{tpu_custom_call.1} parent=5 // pred_fallthru
        _
      %p530 = scmp.le.s32.totalorder 2, %s15
      // Predicated region
      $region41: #{tpu_custom_call.1} parent=5 // pred_check
        %p531 = pneg %p530
      $region42: #{tpu_custom_call.1} parent=5 // pred_check_branch
        %533 = sbr.rel (%p531) target = $region44
      $region43: #{tpu_custom_call.1} parent=5 // pred_region
        %s534 = ssub.s32 %s15, 2
        // Predicated region
        $region45: #{tpu_custom_call.1} parent=43 // pred_check
          %p535 = pneg %p110
        $region46: #{tpu_custom_call.1} parent=43 // pred_check_branch
          %537 = sbr.rel (%p535) target = $region48
        $region47: #{tpu_custom_call.1} parent=43 // pred_region
          %s538 = sand.u32 %s95, 1
          %s539 = scalar_lea.sflag [#allocation4], %s538
          %s540 = sand.u32 %s95, 1
          %s541 = smul.addr %s540, 64
          %s542 = scalar_lea.vmem [#allocation7], %s541
          %543 = dma.done %s539, 1024
        $region48: #{tpu_custom_call.1} parent=43 // pred_fallthru
          _
      $region44: #{tpu_custom_call.1} parent=5 // pred_fallthru
        _
    $region6: #{tpu_custom_call.1} parent=1 // loop_footer
      %s19 = sadd.s32 1, %s15
    $region7: #{tpu_custom_call.1} parent=1 // loop_footer_branch
      %14 = sbr.rel target = $region3
    $region8: #{tpu_custom_call.1} parent=1 // loop_exit
      _
    %544 = vsyncpa [#allocation3], 1
    %s545 = scalar_lea.sflag [#allocation3], 1
    %546 = vsyncpa %s545, 1
    %547 = vsyncpa [#allocation6], 1
    %s548 = scalar_lea.sflag [#allocation6], 1
    %549 = vsyncpa %s548, 1
    %550 = vsyncpa [#allocation4], 1
    %s551 = scalar_lea.sflag [#allocation4], 1
    %552 = vsyncpa %s551, 1

</llo_original>
